<compile_context>
chip_gen: v7x
topology: tpu7x:2x2x1
jax: 0.10.0
libtpu: 0.0.40
codegen_flags: <defaults>
</compile_context>

<pallas_src>
import jax
import jax.numpy as jnp
from jax.experimental import pallas as pl
from jax.experimental.pallas import tpu as pltpu

NUM_OUT = 2     # logical output dim of the module
MIN_TB = 16     # preferred batch-tile granularity (bf16-friendly sublane packing)


def _round_up(x, m):
    return (x + m - 1) // m * m


def _cdiv(a, b):
    return -(-a // b)


def _pick_tile(B, block_b):
    """Batch tile: multiple of 16, capped by block_b, and small enough to give
    >= 2 grid steps on large batches so both v7x TensorCores get work."""
    if B <= 2 * MIN_TB:                       # tiny batch: single grid step
        return _round_up(B, 8)
    block_b = max(MIN_TB, _round_up(block_b, MIN_TB))
    n_steps = max(2, _cdiv(B, block_b))
    return min(block_b, _round_up(_cdiv(B, n_steps), MIN_TB))


# ----------------------------------------------------------------------------
# Kernel
# ----------------------------------------------------------------------------
def prediction_net_kernel(p1_ref, p2_ref, mf_ref, wb_ref, bb_ref,
                          w1_ref, b1_ref, w2_ref, b2_ref, w3_ref, b3_ref,
                          out_ref):
    f32, bf16 = jnp.float32, jnp.bfloat16
    E = p1_ref.shape[1]
    M = mf_ref.shape[1]

    # Fused branch layer: three dots against the row blocks of the
    # block-diagonal weight, one f32 accumulator -> directly the concat
    # [h1, h2, hm].  The f32->bf16 input casts ride the VPU for free.
    h = jnp.dot(p1_ref[...].astype(bf16), wb_ref[0:E, :],
                preferred_element_type=f32)
    h = h + jnp.dot(p2_ref[...].astype(bf16), wb_ref[E:2 * E, :],
                    preferred_element_type=f32)
    h = h + jnp.dot(mf_ref[...].astype(bf16), wb_ref[2 * E:, :],
                    preferred_element_type=f32)
    h = jnp.maximum(h + bb_ref[...], 0.0).astype(bf16)

    # linear_1 + ReLU
    z = jnp.dot(h, w1_ref[...], preferred_element_type=f32) + b1_ref[...]
    z = jnp.maximum(z, 0.0).astype(bf16)

    # linear_2 + ReLU
    z = jnp.dot(z, w2_ref[...], preferred_element_type=f32) + b2_ref[...]
    z = jnp.maximum(z, 0.0).astype(bf16)

    # linear_3 (no activation) — narrow (tb, 2) store straight to the real
    # output array (8 B/row writeback).
    out_ref[...] = (
        jnp.dot(z, w3_ref[...], preferred_element_type=f32) + b3_ref[...]
    ).astype(out_ref.dtype)


# ----------------------------------------------------------------------------
# Parameter preparation (done once, outside the hot path)
# ----------------------------------------------------------------------------
def prepare_fused_params(params):
    """Block-diagonal branch fusion + bf16 weights (f32 biases)."""
    wp1, wp2, wmf = params["wp1"], params["wp2"], params["wmf"]
    E, H1 = wp1.shape
    M = wmf.shape[0]

    wb = jnp.zeros((2 * E + M, 3 * H1), jnp.float32)
    wb = wb.at[:E, :H1].set(wp1)
    wb = wb.at[E:2 * E, H1:2 * H1].set(wp2)
    wb = wb.at[2 * E:, 2 * H1:].set(wmf)
    bb = jnp.concatenate([params["bp1"], params["bp2"], params["bmf"]], axis=1)

    bf16 = jnp.bfloat16
    return dict(
        wb=wb.astype(bf16), bb=bb,
        w1=params["w1"].astype(bf16), b1=params["b1"],
        w2=params["w2"].astype(bf16), b2=params["b2"],
        w3=params["w3"].astype(bf16), b3=params["b3"],
    )


# ----------------------------------------------------------------------------
# Wrapper
# ----------------------------------------------------------------------------
def prediction_network(p1, p2, mf, fp, *, block_b=4096):
    B, E = p1.shape
    M = mf.shape[1]

    tb = _pick_tile(B, block_b)
    b_pad = _round_up(B, tb)
    if b_pad != B:
        # Only when the batch is not tile-aligned; production-size batches that
        # are multiples of the tile take the copy-free path.
        pad = ((0, b_pad - B), (0, 0))
        p1 = jnp.pad(p1, pad)
        p2 = jnp.pad(p2, pad)
        mf = jnp.pad(mf, pad)

    weights = (fp["wb"], fp["bb"], fp["w1"], fp["b1"],
               fp["w2"], fp["b2"], fp["w3"], fp["b3"])

    def const_spec(a):
        # Full-array block, constant index -> stays VMEM-resident across grid.
        return pl.BlockSpec(a.shape, lambda i: (0, 0))

    out = pl.pallas_call(
        prediction_net_kernel,
        out_shape=jax.ShapeDtypeStruct((b_pad, NUM_OUT), jnp.float32),
        grid=(b_pad // tb,),
        in_specs=[pl.BlockSpec((tb, E), lambda i: (i, 0)),
                  pl.BlockSpec((tb, E), lambda i: (i, 0)),
                  pl.BlockSpec((tb, M), lambda i: (i, 0))]
                 + [const_spec(w) for w in weights],
        out_specs=pl.BlockSpec((tb, NUM_OUT), lambda i: (i, 0)),
        compiler_params=pltpu.CompilerParams(
            dimension_semantics=("parallel",)),
    )(p1, p2, mf, *weights)

    return out if b_pad == B else out[:B]


# ----------------------------------------------------------------------------
# Parameters / references
# ----------------------------------------------------------------------------
def init_params(key, E, M, H1, H2, H3):
    """Deterministic synthetic parameters (PyTorch nn.Linear, transposed)."""
    ks = jax.random.split(key, 12)

    def lin(kw, kb, fan_in, fan_out):
        bound = 1.0 / jnp.sqrt(fan_in)
        w = jax.random.uniform(kw, (fan_in, fan_out), jnp.float32, -bound, bound)
        b = jax.random.uniform(kb, (1, fan_out), jnp.float32, -bound, bound)
        return w, b

    wp1, bp1 = lin(ks[0], ks[1], E, H1)
    wp2, bp2 = lin(ks[2], ks[3], E, H1)
    wmf, bmf = lin(ks[4], ks[5], M, H1)
    w1, b1 = lin(ks[6], ks[7], 3 * H1, H2)
    w2, b2 = lin(ks[8], ks[9], H2, H3)
    w3, b3 = lin(ks[10], ks[11], H3, NUM_OUT)
    return dict(wp1=wp1, bp1=bp1, wp2=wp2, bp2=bp2, wmf=wmf, bmf=bmf,
                w1=w1, b1=b1, w2=w2, b2=b2, w3=w3, b3=b3)


def reference_f32(p1, p2, mf, P):
    """Exact f32 semantics of the original PyTorch module."""
    relu = lambda x: jnp.maximum(x, 0.0)
    h1 = relu(p1 @ P["wp1"] + P["bp1"])
    h2 = relu(p2 @ P["wp2"] + P["bp2"])
    hm = relu(mf @ P["wmf"] + P["bmf"])
    c = jnp.concatenate([h1, h2, hm], axis=1)
    c = relu(c @ P["w1"] + P["b1"])
    c = relu(c @ P["w2"] + P["b2"])
    return c @ P["w3"] + P["b3"]


def reference_bf16(p1, p2, mf, fp):
    """Pure-JAX mirror of the kernel's bf16-weight / f32-accumulate arithmetic."""
    f32, bf16 = jnp.float32, jnp.bfloat16
    relu = lambda x: jnp.maximum(x, 0.0)
    x = jnp.concatenate([p1, p2, mf], axis=1).astype(bf16)
    h = relu(jnp.dot(x, fp["wb"], preferred_element_type=f32) + fp["bb"]).astype(bf16)
    z = relu(jnp.dot(h, fp["w1"], preferred_element_type=f32) + fp["b1"]).astype(bf16)
    z = relu(jnp.dot(z, fp["w2"], preferred_element_type=f32) + fp["b2"]).astype(bf16)
    return jnp.dot(z, fp["w3"], preferred_element_type=f32) + fp["b3"]


# ----------------------------------------------------------------------------
if __name__ == "__main__":
    # Small, forward-consistent sizes.
    B = 8                     # batch
    E = 16                    # players_embedding_size
    M = 8                     # match_feature_size
    H1, H2, H3 = 32, 32, 16   # hidden sizes

    key = jax.random.PRNGKey(0)
    k_p1, k_p2, k_mf, k_params = jax.random.split(key, 4)
    p1 = jax.random.normal(k_p1, (B, E), jnp.float32)
    p2 = jax.random.normal(k_p2, (B, E), jnp.float32)
    mf = jax.random.normal(k_mf, (B, M), jnp.float32)
    params = init_params(k_params, E, M, H1, H2, H3)
    fused = prepare_fused_params(params)

    # --- small-batch (single grid step) ---
    out = jax.block_until_ready(prediction_network(p1, p2, mf, fused))
    assert out.shape == (B, NUM_OUT)

    ref_bf16 = reference_bf16(p1, p2, mf, fused)
    assert jnp.allclose(out, ref_bf16, atol=1e-3, rtol=1e-3), "mismatch vs bf16 reference"

    ref_f32 = reference_f32(p1, p2, mf, params)
    assert jnp.allclose(out, ref_f32, atol=5e-2, rtol=5e-2), "mismatch vs f32 reference"

    # --- larger batch exercises the multi-step (pipelined, ragged) path ---
    B2 = 300
    kb1, kb2, kb3 = jax.random.split(jax.random.PRNGKey(1), 3)
    p1b = jax.random.normal(kb1, (B2, E), jnp.float32)
    p2b = jax.random.normal(kb2, (B2, E), jnp.float32)
    mfb = jax.random.normal(kb3, (B2, M), jnp.float32)
    out2 = jax.block_until_ready(prediction_network(p1b, p2b, mfb, fused, block_b=128))
    ref2 = reference_bf16(p1b, p2b, mfb, fused)
    assert out2.shape == (B2, NUM_OUT)
    assert jnp.allclose(out2, ref2, atol=1e-3, rtol=1e-3), "gridded path mismatch"

    print("KERNEL_OK")
</pallas_src>

<mosaic_0001>
module attributes {stable_mosaic.version = 11 : i64} {
  func.func @prediction_net_kernel(%arg0: i32, %arg1: memref<8x16xf32, #tpu.memory_space<vmem>>, %arg2: memref<8x16xf32, #tpu.memory_space<vmem>>, %arg3: memref<8x8xf32, #tpu.memory_space<vmem>>, %arg4: memref<40x96xbf16, #tpu.memory_space<vmem>>, %arg5: memref<1x96xf32, #tpu.memory_space<vmem>>, %arg6: memref<96x32xbf16, #tpu.memory_space<vmem>>, %arg7: memref<1x32xf32, #tpu.memory_space<vmem>>, %arg8: memref<32x16xbf16, #tpu.memory_space<vmem>>, %arg9: memref<1x16xf32, #tpu.memory_space<vmem>>, %arg10: memref<16x2xbf16, #tpu.memory_space<vmem>>, %arg11: memref<1x2xf32, #tpu.memory_space<vmem>>, %arg12: memref<8x2xf32, #tpu.memory_space<vmem>>) attributes {dimension_semantics = [#tpu.dimension_semantics<parallel>], iteration_bounds = array<i64: 1>, scalar_prefetch = 0 : i64, scratch_operands = 0 : i64, tpu.core_type = #tpu.core_type<tc>, window_params = [{transform_indices = @transform_0, window_bounds = array<i64: 8, 16>}, {transform_indices = @transform_1, window_bounds = array<i64: 8, 16>}, {transform_indices = @transform_2, window_bounds = array<i64: 8, 8>}, {pipeline_mode = #tpu.pipeline_mode<synchronous>, transform_indices = @transform_3, window_bounds = array<i64: 40, 96>}, {pipeline_mode = #tpu.pipeline_mode<synchronous>, transform_indices = @transform_4, window_bounds = array<i64: 1, 96>}, {pipeline_mode = #tpu.pipeline_mode<synchronous>, transform_indices = @transform_5, window_bounds = array<i64: 96, 32>}, {pipeline_mode = #tpu.pipeline_mode<synchronous>, transform_indices = @transform_6, window_bounds = array<i64: 1, 32>}, {pipeline_mode = #tpu.pipeline_mode<synchronous>, transform_indices = @transform_7, window_bounds = array<i64: 32, 16>}, {pipeline_mode = #tpu.pipeline_mode<synchronous>, transform_indices = @transform_8, window_bounds = array<i64: 1, 16>}, {pipeline_mode = #tpu.pipeline_mode<synchronous>, transform_indices = @transform_9, window_bounds = array<i64: 16, 2>}, {pipeline_mode = #tpu.pipeline_mode<synchronous>, transform_indices = @transform_10, window_bounds = array<i64: 1, 2>}, {transform_indices = @transform_11, window_bounds = array<i64: 8, 2>}]} {
    %c0 = arith.constant 0 : index
    %c0_0 = arith.constant 0 : index
    %0 = vector.load %arg1[%c0, %c0_0] : memref<8x16xf32, #tpu.memory_space<vmem>>, vector<8x16xf32>
    %1 = arith.truncf %0 : vector<8x16xf32> to vector<8x16xbf16>
    %c0_1 = arith.constant 0 : index
    %c0_2 = arith.constant 0 : index
    %2 = vector.load %arg4[%c0_1, %c0_2] : memref<40x96xbf16, #tpu.memory_space<vmem>>, vector<16x96xbf16>
    %cst = arith.constant dense<0.000000e+00> : vector<8x96xf32>
    %3 = tpu.matmul %1, %2, %cst {dimension_numbers = #tpu.dot_dimension_numbers<[1], [0], [0], [1], [0, 0, 1, 1], [], []>} : vector<8x16xbf16>, vector<16x96xbf16>, vector<8x96xf32> -> vector<8x96xf32>
    %c0_3 = arith.constant 0 : index
    %c0_4 = arith.constant 0 : index
    %4 = vector.load %arg2[%c0_3, %c0_4] : memref<8x16xf32, #tpu.memory_space<vmem>>, vector<8x16xf32>
    %5 = arith.truncf %4 : vector<8x16xf32> to vector<8x16xbf16>
    %c16 = arith.constant 16 : index
    %c0_5 = arith.constant 0 : index
    %6 = vector.load %arg4[%c16, %c0_5] : memref<40x96xbf16, #tpu.memory_space<vmem>>, vector<16x96xbf16>
    %cst_6 = arith.constant dense<0.000000e+00> : vector<8x96xf32>
    %7 = tpu.matmul %5, %6, %cst_6 {dimension_numbers = #tpu.dot_dimension_numbers<[1], [0], [0], [1], [0, 0, 1, 1], [], []>} : vector<8x16xbf16>, vector<16x96xbf16>, vector<8x96xf32> -> vector<8x96xf32>
    %8 = arith.addf %3, %7 : vector<8x96xf32>
    %c0_7 = arith.constant 0 : index
    %c0_8 = arith.constant 0 : index
    %9 = vector.load %arg3[%c0_7, %c0_8] : memref<8x8xf32, #tpu.memory_space<vmem>>, vector<8x8xf32>
    %10 = arith.truncf %9 : vector<8x8xf32> to vector<8x8xbf16>
    %c32 = arith.constant 32 : index
    %c0_9 = arith.constant 0 : index
    %11 = vector.load %arg4[%c32, %c0_9] : memref<40x96xbf16, #tpu.memory_space<vmem>>, vector<8x96xbf16>
    %cst_10 = arith.constant dense<0.000000e+00> : vector<8x96xf32>
    %12 = tpu.matmul %10, %11, %cst_10 {dimension_numbers = #tpu.dot_dimension_numbers<[1], [0], [0], [1], [0, 0, 1, 1], [], []>} : vector<8x8xbf16>, vector<8x96xbf16>, vector<8x96xf32> -> vector<8x96xf32>
    %13 = arith.addf %8, %12 : vector<8x96xf32>
    %c0_11 = arith.constant 0 : index
    %c0_12 = arith.constant 0 : index
    %14 = vector.load %arg5[%c0_11, %c0_12] : memref<1x96xf32, #tpu.memory_space<vmem>>, vector<1x96xf32>
    %15 = vector.broadcast %14 : vector<1x96xf32> to vector<8x96xf32>
    %16 = arith.addf %13, %15 : vector<8x96xf32>
    %cst_13 = arith.constant 0.000000e+00 : f32
    %17 = vector.broadcast %cst_13 : f32 to vector<8x96xf32>
    %18 = arith.maximumf %16, %17 : vector<8x96xf32>
    %19 = arith.truncf %18 : vector<8x96xf32> to vector<8x96xbf16>
    %c0_14 = arith.constant 0 : index
    %c0_15 = arith.constant 0 : index
    %20 = vector.load %arg6[%c0_14, %c0_15] : memref<96x32xbf16, #tpu.memory_space<vmem>>, vector<96x32xbf16>
    %cst_16 = arith.constant dense<0.000000e+00> : vector<8x32xf32>
    %21 = tpu.matmul %19, %20, %cst_16 {dimension_numbers = #tpu.dot_dimension_numbers<[1], [0], [0], [1], [0, 0, 1, 1], [], []>} : vector<8x96xbf16>, vector<96x32xbf16>, vector<8x32xf32> -> vector<8x32xf32>
    %c0_17 = arith.constant 0 : index
    %c0_18 = arith.constant 0 : index
    %22 = vector.load %arg7[%c0_17, %c0_18] : memref<1x32xf32, #tpu.memory_space<vmem>>, vector<1x32xf32>
    %23 = vector.broadcast %22 : vector<1x32xf32> to vector<8x32xf32>
    %24 = arith.addf %21, %23 : vector<8x32xf32>
    %cst_19 = arith.constant 0.000000e+00 : f32
    %25 = vector.broadcast %cst_19 : f32 to vector<8x32xf32>
    %26 = arith.maximumf %24, %25 : vector<8x32xf32>
    %27 = arith.truncf %26 : vector<8x32xf32> to vector<8x32xbf16>
    %c0_20 = arith.constant 0 : index
    %c0_21 = arith.constant 0 : index
    %28 = vector.load %arg8[%c0_20, %c0_21] : memref<32x16xbf16, #tpu.memory_space<vmem>>, vector<32x16xbf16>
    %cst_22 = arith.constant dense<0.000000e+00> : vector<8x16xf32>
    %29 = tpu.matmul %27, %28, %cst_22 {dimension_numbers = #tpu.dot_dimension_numbers<[1], [0], [0], [1], [0, 0, 1, 1], [], []>} : vector<8x32xbf16>, vector<32x16xbf16>, vector<8x16xf32> -> vector<8x16xf32>
    %c0_23 = arith.constant 0 : index
    %c0_24 = arith.constant 0 : index
    %30 = vector.load %arg9[%c0_23, %c0_24] : memref<1x16xf32, #tpu.memory_space<vmem>>, vector<1x16xf32>
    %31 = vector.broadcast %30 : vector<1x16xf32> to vector<8x16xf32>
    %32 = arith.addf %29, %31 : vector<8x16xf32>
    %cst_25 = arith.constant 0.000000e+00 : f32
    %33 = vector.broadcast %cst_25 : f32 to vector<8x16xf32>
    %34 = arith.maximumf %32, %33 : vector<8x16xf32>
    %35 = arith.truncf %34 : vector<8x16xf32> to vector<8x16xbf16>
    %c0_26 = arith.constant 0 : index
    %c0_27 = arith.constant 0 : index
    %36 = vector.load %arg10[%c0_26, %c0_27] : memref<16x2xbf16, #tpu.memory_space<vmem>>, vector<16x2xbf16>
    %cst_28 = arith.constant dense<0.000000e+00> : vector<8x2xf32>
    %37 = tpu.matmul %35, %36, %cst_28 {dimension_numbers = #tpu.dot_dimension_numbers<[1], [0], [0], [1], [0, 0, 1, 1], [], []>} : vector<8x16xbf16>, vector<16x2xbf16>, vector<8x2xf32> -> vector<8x2xf32>
    %c0_29 = arith.constant 0 : index
    %c0_30 = arith.constant 0 : index
    %38 = vector.load %arg11[%c0_29, %c0_30] : memref<1x2xf32, #tpu.memory_space<vmem>>, vector<1x2xf32>
    %39 = vector.broadcast %38 : vector<1x2xf32> to vector<8x2xf32>
    %40 = arith.addf %37, %39 : vector<8x2xf32>
    %c0_31 = arith.constant 0 : index
    %c0_32 = arith.constant 0 : index
    %41 = vector.load %arg12[%c0_31, %c0_32] : memref<8x2xf32, #tpu.memory_space<vmem>>, vector<8x2xf32>
    tpu.vector_store %arg12[%c0_31, %c0_32], %40 {strides = array<i32>} : memref<8x2xf32, #tpu.memory_space<vmem>>, vector<8x2xf32>,
    return
  }
  func.func @transform_0(%arg0: i32) -> (i32, i32) {
    %c0_i32 = arith.constant 0 : i32
    %c0_i32_0 = arith.constant 0 : i32
    return %arg0, %c0_i32 : i32, i32
  }
  func.func @transform_1(%arg0: i32) -> (i32, i32) {
    %c0_i32 = arith.constant 0 : i32
    %c0_i32_0 = arith.constant 0 : i32
    return %arg0, %c0_i32 : i32, i32
  }
  func.func @transform_2(%arg0: i32) -> (i32, i32) {
    %c0_i32 = arith.constant 0 : i32
    %c0_i32_0 = arith.constant 0 : i32
    return %arg0, %c0_i32 : i32, i32
  }
  func.func @transform_3(%arg0: i32) -> (i32, i32) {
    %c0_i32 = arith.constant 0 : i32
    %c0_i32_0 = arith.constant 0 : i32
    %c0_i32_1 = arith.constant 0 : i32
    return %c0_i32, %c0_i32_0 : i32, i32
  }
  func.func @transform_4(%arg0: i32) -> (i32, i32) {
    %c0_i32 = arith.constant 0 : i32
    %c0_i32_0 = arith.constant 0 : i32
    %c0_i32_1 = arith.constant 0 : i32
    return %c0_i32, %c0_i32_0 : i32, i32
  }
  func.func @transform_5(%arg0: i32) -> (i32, i32) {
    %c0_i32 = arith.constant 0 : i32
    %c0_i32_0 = arith.constant 0 : i32
    %c0_i32_1 = arith.constant 0 : i32
    return %c0_i32, %c0_i32_0 : i32, i32
  }
  func.func @transform_6(%arg0: i32) -> (i32, i32) {
    %c0_i32 = arith.constant 0 : i32
    %c0_i32_0 = arith.constant 0 : i32
    %c0_i32_1 = arith.constant 0 : i32
    return %c0_i32, %c0_i32_0 : i32, i32
  }
  func.func @transform_7(%arg0: i32) -> (i32, i32) {
    %c0_i32 = arith.constant 0 : i32
    %c0_i32_0 = arith.constant 0 : i32
    %c0_i32_1 = arith.constant 0 : i32
    return %c0_i32, %c0_i32_0 : i32, i32
  }
  func.func @transform_8(%arg0: i32) -> (i32, i32) {
    %c0_i32 = arith.constant 0 : i32
    %c0_i32_0 = arith.constant 0 : i32
    %c0_i32_1 = arith.constant 0 : i32
    return %c0_i32, %c0_i32_0 : i32, i32
  }
  func.func @transform_9(%arg0: i32) -> (i32, i32) {
    %c0_i32 = arith.constant 0 : i32
    %c0_i32_0 = arith.constant 0 : i32
    %c0_i32_1 = arith.constant 0 : i32
    return %c0_i32, %c0_i32_0 : i32, i32
  }
  func.func @transform_10(%arg0: i32) -> (i32, i32) {
    %c0_i32 = arith.constant 0 : i32
    %c0_i32_0 = arith.constant 0 : i32
    %c0_i32_1 = arith.constant 0 : i32
    return %c0_i32, %c0_i32_0 : i32, i32
  }
  func.func @transform_11(%arg0: i32) -> (i32, i32) {
    %c0_i32 = arith.constant 0 : i32
    %c0_i32_0 = arith.constant 0 : i32
    return %arg0, %c0_i32 : i32, i32
  }
}

</mosaic_0001>

<llo_original>
// kernel: tpu_custom_call.1
$region0: #{tpu_custom_call.1}
  #allocation0 [shape = 'u32[]', space=smem, size = 0x4, offset = 0x4, fixed_abs, tag = 'smem constant byte address 0x4 - core index']
  #allocation1 [shape = 'u32[144,128]{1,0:T(1,128)}', space=vmem, size = 0x12000, scoped, tag = 'internal scratch']
  %s0 = inlined_call_operand.vmem [shape: f32[8,16], index: 0, kind: input, shape index: {}]
  %s1 = inlined_call_operand.vmem [shape: f32[8,16], index: 1, kind: input, shape index: {}]
  %s2 = inlined_call_operand.vmem [shape: f32[8,8], index: 2, kind: input, shape index: {}]
  %s3 = inlined_call_operand.vmem [shape: bf16[40,96], index: 3, kind: input, shape index: {}]
  %s4 = inlined_call_operand.vmem [shape: f32[1,96], index: 4, kind: input, shape index: {}]
  %s5 = inlined_call_operand.vmem [shape: bf16[96,32], index: 5, kind: input, shape index: {}]
  %s6 = inlined_call_operand.vmem [shape: f32[1,32], index: 6, kind: input, shape index: {}]
  %s7 = inlined_call_operand.vmem [shape: bf16[32,16], index: 7, kind: input, shape index: {}]
  %s8 = inlined_call_operand.vmem [shape: f32[1,16], index: 8, kind: input, shape index: {}]
  %s9 = inlined_call_operand.vmem [shape: bf16[16,2], index: 9, kind: input, shape index: {}]
  %s10 = inlined_call_operand.vmem [shape: f32[1,2], index: 10, kind: input, shape index: {}]
  %s11 = inlined_call_operand.vmem [shape: f32[8,2], index: 11, kind: output, shape index: {}]
  %s12 = sld [smem:[#allocation0]]
  $region54: #{tpu_custom_call.1} parent=0
    _
  %s14 = ssub.s32 1, %s12
  %s15 = scalar_select 0, %s14, %s12
  // Predicated region
  $region2: #{tpu_custom_call.1} parent=0 // pred_check
    _
  $region3: #{tpu_custom_call.1} parent=0 // pred_check_branch
    %17 = sbr.rel (0) target = $region5
  $region4: #{tpu_custom_call.1} parent=0 // pred_region
    _
  $region5: #{tpu_custom_call.1} parent=0 // pred_fallthru
    _
  // Predicated region
  $region6: #{tpu_custom_call.1} parent=0 // pred_check
    _
  $region7: #{tpu_custom_call.1} parent=0 // pred_check_branch
    %19 = sbr.rel (0) target = $region9
  $region8: #{tpu_custom_call.1} parent=0 // pred_region
    _
  $region9: #{tpu_custom_call.1} parent=0 // pred_fallthru
    _
  // Predicated region
  $region10: #{tpu_custom_call.1} parent=0 // pred_check
    _
  $region11: #{tpu_custom_call.1} parent=0 // pred_check_branch
    %21 = sbr.rel (0) target = $region13
  $region12: #{tpu_custom_call.1} parent=0 // pred_region
    _
  $region13: #{tpu_custom_call.1} parent=0 // pred_fallthru
    _
  // Predicated region
  $region14: #{tpu_custom_call.1} parent=0 // pred_check
    _
  $region15: #{tpu_custom_call.1} parent=0 // pred_check_branch
    %23 = sbr.rel (0) target = $region17
  $region16: #{tpu_custom_call.1} parent=0 // pred_region
    _
  $region17: #{tpu_custom_call.1} parent=0 // pred_fallthru
    _
  // Predicated region
  $region18: #{tpu_custom_call.1} parent=0 // pred_check
    _
  $region19: #{tpu_custom_call.1} parent=0 // pred_check_branch
    %25 = sbr.rel (0) target = $region21
  $region20: #{tpu_custom_call.1} parent=0 // pred_region
    _
  $region21: #{tpu_custom_call.1} parent=0 // pred_fallthru
    _
  // Predicated region
  $region22: #{tpu_custom_call.1} parent=0 // pred_check
    _
  $region23: #{tpu_custom_call.1} parent=0 // pred_check_branch
    %27 = sbr.rel (0) target = $region25
  $region24: #{tpu_custom_call.1} parent=0 // pred_region
    _
  $region25: #{tpu_custom_call.1} parent=0 // pred_fallthru
    _
  // Predicated region
  $region26: #{tpu_custom_call.1} parent=0 // pred_check
    _
  $region27: #{tpu_custom_call.1} parent=0 // pred_check_branch
    %29 = sbr.rel (0) target = $region29
  $region28: #{tpu_custom_call.1} parent=0 // pred_region
    _
  $region29: #{tpu_custom_call.1} parent=0 // pred_fallthru
    _
  // Predicated region
  $region30: #{tpu_custom_call.1} parent=0 // pred_check
    _
  $region31: #{tpu_custom_call.1} parent=0 // pred_check_branch
    %31 = sbr.rel (0) target = $region33
  $region32: #{tpu_custom_call.1} parent=0 // pred_region
    _
  $region33: #{tpu_custom_call.1} parent=0 // pred_fallthru
    _
  // Predicated region
  $region34: #{tpu_custom_call.1} parent=0 // pred_check
    _
  $region35: #{tpu_custom_call.1} parent=0 // pred_check_branch
    %33 = sbr.rel (0) target = $region37
  $region36: #{tpu_custom_call.1} parent=0 // pred_region
    _
  $region37: #{tpu_custom_call.1} parent=0 // pred_fallthru
    _
  // Predicated region
  $region38: #{tpu_custom_call.1} parent=0 // pred_check
    _
  $region39: #{tpu_custom_call.1} parent=0 // pred_check_branch
    %35 = sbr.rel (0) target = $region41
  $region40: #{tpu_custom_call.1} parent=0 // pred_region
    _
  $region41: #{tpu_custom_call.1} parent=0 // pred_fallthru
    _
  // Predicated region
  $region42: #{tpu_custom_call.1} parent=0 // pred_check
    _
  $region43: #{tpu_custom_call.1} parent=0 // pred_check_branch
    %37 = sbr.rel (0) target = $region45
  $region44: #{tpu_custom_call.1} parent=0 // pred_region
    _
  $region45: #{tpu_custom_call.1} parent=0 // pred_fallthru
    _
  %v39 = vld [vmem:[%s0] sm:$0xff]
  %v40 = vpack.c.bf16 %v39, %v39
  %v41 = vld [vmem:[%s3] sm:$0xf]
  %v42 = vld [vmem:[%s3 + $0x4] sm:$0xf]
  %v43 = vld [vmem:[%s1] sm:$0xff]
  %v44 = vpack.c.bf16 %v43, %v43
  %v45 = vld [vmem:[%s3 + $0x8] sm:$0xf]
  %v46 = vld [vmem:[%s3 + $0xc] sm:$0xf]
  %v49 = vunpack.c.l.b16 %v45
  %v50 = vunpack.c.l.b16 %v46
  %v51 = vpack.c.b16 %v50, %v49
  %vm53 = vcmask 130048
  %v55 = vsel %vm53, %v44, 0
  %57 = vmatprep.subr.bf16.mxu0 0
  %58 = vmatpush1.bf16.msra.mxu0 %v51
  %59 = vmatprep.subr.bf16.mxu0 0
  %60 = vmatpush1.bf16.msra.mxu0 0
  %61 = vmatprep.subr.bf16.mxu0 0
  %62 = vmatpush1.bf16.msra.mxu0 0
  %63 = vmatprep.subr.bf16.mxu0 0
  %64 = vmatpush1.bf16.msra.mxu0 0
  %65 = vmatprep.subr.bf16.mxu0 0
  %66 = vmatpush1.bf16.msra.mxu0 0
  %67 = vmatprep.subr.bf16.mxu0 0
  %68 = vmatpush1.bf16.msra.mxu0 0
  %69 = vmatprep.subr.bf16.mxu0 0
  %70 = vmatpush1.bf16.msra.mxu0 0
  %71 = vmatprep.subr.bf16.mxu0 0
  %72 = vmatpush1.bf16.msra.mxu0 0
  %73 = vmatprep.subr.bf16.mxu0 0
  %74 = vmatpush1.bf16.msra.mxu0 0
  %75 = vmatprep.subr.bf16.mxu0 0
  %76 = vmatpush1.bf16.msra.mxu0 0
  %77 = vmatprep.subr.bf16.mxu0 0
  %78 = vmatpush1.bf16.msra.mxu0 0
  %79 = vmatprep.subr.bf16.mxu0 0
  %80 = vmatpush1.bf16.msra.mxu0 0
  %81 = vmatprep.subr.bf16.mxu0 0
  %82 = vmatpush1.bf16.msra.mxu0 0
  %83 = vmatprep.subr.bf16.mxu0 0
  %84 = vmatpush1.bf16.msra.mxu0 0
  %85 = vmatprep.subr.bf16.mxu0 0
  %86 = vmatpush1.bf16.msra.mxu0 0
  %87 = vmatprep.subr.bf16.mxu0 0
  %88 = vmatpush1.bf16.msra.mxu0 0
  %89 = vmatprep.mubr.bf16.mxu0 0
  %90 = vmatmul.mubr.bf16.gmra.mrb[0].mxu0 %v55
  %v91 = vpop.f32.mrb[0].mxu0
  %v92 = vadd.f32 0.0, %v91
  %v93 = vpop.f32.mrb[0].mxu0
  %v94 = vpop.f32.mrb[0].mxu0
  %v95 = vpop.f32.mrb[0].mxu0
  %96 = vdwg.mxu0
  %v99 = vunpack.c.l.b16 %v41
  %v100 = vunpack.c.l.b16 %v42
  %v101 = vpack.c.b16 %v100, %v99
  %v104 = vsel %vm53, %v40, 0
  %106 = vmatprep.subr.bf16.mxu0 0
  %107 = vmatpush1.bf16.msra.mxu0 %v101
  %108 = vmatprep.subr.bf16.mxu0 0
  %109 = vmatpush1.bf16.msra.mxu0 0
  %110 = vmatprep.subr.bf16.mxu0 0
  %111 = vmatpush1.bf16.msra.mxu0 0
  %112 = vmatprep.subr.bf16.mxu0 0
  %113 = vmatpush1.bf16.msra.mxu0 0
  %114 = vmatprep.subr.bf16.mxu0 0
  %115 = vmatpush1.bf16.msra.mxu0 0
  %116 = vmatprep.subr.bf16.mxu0 0
  %117 = vmatpush1.bf16.msra.mxu0 0
  %118 = vmatprep.subr.bf16.mxu0 0
  %119 = vmatpush1.bf16.msra.mxu0 0
  %120 = vmatprep.subr.bf16.mxu0 0
  %121 = vmatpush1.bf16.msra.mxu0 0
  %122 = vmatprep.subr.bf16.mxu0 0
  %123 = vmatpush1.bf16.msra.mxu0 0
  %124 = vmatprep.subr.bf16.mxu0 0
  %125 = vmatpush1.bf16.msra.mxu0 0
  %126 = vmatprep.subr.bf16.mxu0 0
  %127 = vmatpush1.bf16.msra.mxu0 0
  %128 = vmatprep.subr.bf16.mxu0 0
  %129 = vmatpush1.bf16.msra.mxu0 0
  %130 = vmatprep.subr.bf16.mxu0 0
  %131 = vmatpush1.bf16.msra.mxu0 0
  %132 = vmatprep.subr.bf16.mxu0 0
  %133 = vmatpush1.bf16.msra.mxu0 0
  %134 = vmatprep.subr.bf16.mxu0 0
  %135 = vmatpush1.bf16.msra.mxu0 0
  %136 = vmatprep.subr.bf16.mxu0 0
  %137 = vmatpush1.bf16.msra.mxu0 0
  %138 = vmatprep.mubr.bf16.mxu0 0
  %139 = vmatmul.mubr.bf16.gmra.mrb[0].mxu0 %v104
  %v140 = vpop.f32.mrb[0].mxu0
  %v141 = vadd.f32 %v92, %v140
  %v142 = vpop.f32.mrb[0].mxu0
  %v143 = vpop.f32.mrb[0].mxu0
  %v144 = vpop.f32.mrb[0].mxu0
  %145 = vdwg.mxu0
  %v146 = vld [vmem:[%s2] sm:$0xff]
  %v147 = vpack.c.bf16 %v146, %v146
  %v148 = vld [vmem:[%s3 + $0x10] sm:$0xf]
  %vm149 = vcmask 64512
  %v151 = vsel %vm149, %v147, 0
  %vm153 = vcmask 1043456
  %v155 = vsel %vm153, %v148, 0
  %157 = vmatprep.subr.bf16.mxu0 0
  %158 = vmatpush1.bf16.msra.mxu0 %v155
  %159 = vmatprep.subr.bf16.mxu0 0
  %160 = vmatpush1.bf16.msra.mxu0 0
  %161 = vmatprep.subr.bf16.mxu0 0
  %162 = vmatpush1.bf16.msra.mxu0 0
  %163 = vmatprep.subr.bf16.mxu0 0
  %164 = vmatpush1.bf16.msra.mxu0 0
  %165 = vmatprep.subr.bf16.mxu0 0
  %166 = vmatpush1.bf16.msra.mxu0 0
  %167 = vmatprep.subr.bf16.mxu0 0
  %168 = vmatpush1.bf16.msra.mxu0 0
  %169 = vmatprep.subr.bf16.mxu0 0
  %170 = vmatpush1.bf16.msra.mxu0 0
  %171 = vmatprep.subr.bf16.mxu0 0
  %172 = vmatpush1.bf16.msra.mxu0 0
  %173 = vmatprep.subr.bf16.mxu0 0
  %174 = vmatpush1.bf16.msra.mxu0 0
  %175 = vmatprep.subr.bf16.mxu0 0
  %176 = vmatpush1.bf16.msra.mxu0 0
  %177 = vmatprep.subr.bf16.mxu0 0
  %178 = vmatpush1.bf16.msra.mxu0 0
  %179 = vmatprep.subr.bf16.mxu0 0
  %180 = vmatpush1.bf16.msra.mxu0 0
  %181 = vmatprep.subr.bf16.mxu0 0
  %182 = vmatpush1.bf16.msra.mxu0 0
  %183 = vmatprep.subr.bf16.mxu0 0
  %184 = vmatpush1.bf16.msra.mxu0 0
  %185 = vmatprep.subr.bf16.mxu0 0
  %186 = vmatpush1.bf16.msra.mxu0 0
  %187 = vmatprep.subr.bf16.mxu0 0
  %188 = vmatpush1.bf16.msra.mxu0 0
  %189 = vmatprep.mubr.bf16.mxu0 0
  %190 = vmatmul.mubr.bf16.gmra.mrb[0].mxu0 %v151
  %v191 = vpop.f32.mrb[0].mxu0
  %v192 = vadd.f32 0.0, %v191
  %v193 = vpop.f32.mrb[0].mxu0
  %v194 = vpop.f32.mrb[0].mxu0
  %v195 = vpop.f32.mrb[0].mxu0
  %196 = vdwg.mxu0
  %v197 = vadd.f32 %v141, %v192
  %v198 = vld [vmem:[%s4] sm:$0x1]
  %v200 = vlaneseq
  %v201 = vshrl.u32 %v200, 7
  %v202 = vsub.s32 0, %v201
  %v203 = vrot.slane %v198, %v202
  %v205 = vadd.f32 %v197, %v203
  %v206 = vmax.f32 %v205, 0.0
  %v207 = vpack.c.bf16 %v206, %v206
  %v208 = vld [vmem:[%s5] sm:$0xf]
  %v209 = vld [vmem:[%s5 + $0x4] sm:$0xf]
  %v210 = vld [vmem:[%s5 + $0x8] sm:$0xf]
  %v211 = vld [vmem:[%s5 + $0xc] sm:$0xf]
  %v212 = vld [vmem:[%s5 + $0x10] sm:$0xf]
  %v213 = vld [vmem:[%s5 + $0x14] sm:$0xf]
  %v214 = vld [vmem:[%s5 + $0x18] sm:$0xf]
  %v215 = vld [vmem:[%s5 + $0x1c] sm:$0xf]
  %v216 = vld [vmem:[%s5 + $0x20] sm:$0xf]
  %v217 = vld [vmem:[%s5 + $0x24] sm:$0xf]
  %v218 = vld [vmem:[%s5 + $0x28] sm:$0xf]
  %v219 = vld [vmem:[%s5 + $0x2c] sm:$0xf]
  %v220 = vld [vmem:[%s6] sm:$0x1]
  %v222 = vlaneseq
  %v223 = vshrl.u32 %v222, 7
  %v224 = vsub.s32 0, %v223
  %v225 = vrot.slane %v220, %v224
  %v239 = vunpack.c.l.b16 %v208
  %v240 = vunpack.c.l.b16 %v209
  %v241 = vunpack.c.l.b16 %v210
  %v242 = vunpack.c.l.b16 %v211
  %v243 = vunpack.c.l.b16 %v212
  %v244 = vunpack.c.l.b16 %v213
  %v245 = vunpack.c.l.b16 %v214
  %v246 = vunpack.c.l.b16 %v215
  %v247 = vunpack.c.l.b16 %v216
  %v248 = vunpack.c.l.b16 %v217
  %v249 = vunpack.c.l.b16 %v218
  %v250 = vunpack.c.l.b16 %v219
  %v251 = vpack.c.b16 %v240, %v239
  %v252 = vpack.c.b16 %v242, %v241
  %v253 = vpack.c.b16 %v244, %v243
  %v254 = vpack.c.b16 %v246, %v245
  %v255 = vpack.c.b16 %v248, %v247
  %v256 = vpack.c.b16 %v250, %v249
  %vm263 = vcmask 785408
  %v265 = vsel %vm263, %v207, 0
  %267 = vmatprep.subr.bf16.mxu0 0
  %268 = vmatpush1.bf16.msra.mxu0 %v251
  %269 = vmatprep.subr.bf16.mxu0 0
  %270 = vmatpush1.bf16.msra.mxu0 %v252
  %271 = vmatprep.subr.bf16.mxu0 0
  %272 = vmatpush1.bf16.msra.mxu0 %v253
  %273 = vmatprep.subr.bf16.mxu0 0
  %274 = vmatpush1.bf16.msra.mxu0 %v254
  %275 = vmatprep.subr.bf16.mxu0 0
  %276 = vmatpush1.bf16.msra.mxu0 %v255
  %277 = vmatprep.subr.bf16.mxu0 0
  %278 = vmatpush1.bf16.msra.mxu0 %v256
  %279 = vmatprep.subr.bf16.mxu0 0
  %280 = vmatpush1.bf16.msra.mxu0 0
  %281 = vmatprep.subr.bf16.mxu0 0
  %282 = vmatpush1.bf16.msra.mxu0 0
  %283 = vmatprep.subr.bf16.mxu0 0
  %284 = vmatpush1.bf16.msra.mxu0 0
  %285 = vmatprep.subr.bf16.mxu0 0
  %286 = vmatpush1.bf16.msra.mxu0 0
  %287 = vmatprep.subr.bf16.mxu0 0
  %288 = vmatpush1.bf16.msra.mxu0 0
  %289 = vmatprep.subr.bf16.mxu0 0
  %290 = vmatpush1.bf16.msra.mxu0 0
  %291 = vmatprep.subr.bf16.mxu0 0
  %292 = vmatpush1.bf16.msra.mxu0 0
  %293 = vmatprep.subr.bf16.mxu0 0
  %294 = vmatpush1.bf16.msra.mxu0 0
  %295 = vmatprep.subr.bf16.mxu0 0
  %296 = vmatpush1.bf16.msra.mxu0 0
  %297 = vmatprep.subr.bf16.mxu0 0
  %298 = vmatpush1.bf16.msra.mxu0 0
  %299 = vmatprep.mubr.bf16.mxu0 0
  %300 = vmatmul.mubr.bf16.gmra.mrb[0].mxu0 %v265
  %v301 = vpop.f32.mrb[0].mxu0
  %v302 = vadd.f32 %v225, %v301
  %v303 = vpop.f32.mrb[0].mxu0
  %v304 = vpop.f32.mrb[0].mxu0
  %v305 = vpop.f32.mrb[0].mxu0
  %306 = vdwg.mxu0
  %v307 = vmax.f32 %v302, 0.0
  %v308 = vpack.c.bf16 %v307, %v307
  %v309 = vld [vmem:[%s7] sm:$0xf]
  %v310 = vld [vmem:[%s7 + $0x4] sm:$0xf]
  %v311 = vld [vmem:[%s7 + $0x8] sm:$0xf]
  %v312 = vld [vmem:[%s7 + $0xc] sm:$0xf]
  %v313 = vld [vmem:[%s8] sm:$0x1]
  %v315 = vlaneseq
  %v316 = vshrl.u32 %v315, 7
  %v317 = vsub.s32 0, %v316
  %v318 = vrot.slane %v313, %v317
  %v324 = vunpack.c.l.b16 %v309
  %v325 = vunpack.c.l.b16 %v310
  %v326 = vunpack.c.l.b16 %v311
  %v327 = vunpack.c.l.b16 %v312
  %v328 = vpack.c.b16 %v325, %v324
  %v329 = vpack.c.b16 %v327, %v326
  %vm332 = vcmask 261120
  %v334 = vsel %vm332, %v308, 0
  %336 = vmatprep.subr.bf16.mxu0 0
  %337 = vmatpush1.bf16.msra.mxu0 %v328
  %338 = vmatprep.subr.bf16.mxu0 0
  %339 = vmatpush1.bf16.msra.mxu0 %v329
  %340 = vmatprep.subr.bf16.mxu0 0
  %341 = vmatpush1.bf16.msra.mxu0 0
  %342 = vmatprep.subr.bf16.mxu0 0
  %343 = vmatpush1.bf16.msra.mxu0 0
  %344 = vmatprep.subr.bf16.mxu0 0
  %345 = vmatpush1.bf16.msra.mxu0 0
  %346 = vmatprep.subr.bf16.mxu0 0
  %347 = vmatpush1.bf16.msra.mxu0 0
  %348 = vmatprep.subr.bf16.mxu0 0
  %349 = vmatpush1.bf16.msra.mxu0 0
  %350 = vmatprep.subr.bf16.mxu0 0
  %351 = vmatpush1.bf16.msra.mxu0 0
  %352 = vmatprep.subr.bf16.mxu0 0
  %353 = vmatpush1.bf16.msra.mxu0 0
  %354 = vmatprep.subr.bf16.mxu0 0
  %355 = vmatpush1.bf16.msra.mxu0 0
  %356 = vmatprep.subr.bf16.mxu0 0
  %357 = vmatpush1.bf16.msra.mxu0 0
  %358 = vmatprep.subr.bf16.mxu0 0
  %359 = vmatpush1.bf16.msra.mxu0 0
  %360 = vmatprep.subr.bf16.mxu0 0
  %361 = vmatpush1.bf16.msra.mxu0 0
  %362 = vmatprep.subr.bf16.mxu0 0
  %363 = vmatpush1.bf16.msra.mxu0 0
  %364 = vmatprep.subr.bf16.mxu0 0
  %365 = vmatpush1.bf16.msra.mxu0 0
  %366 = vmatprep.subr.bf16.mxu0 0
  %367 = vmatpush1.bf16.msra.mxu0 0
  %368 = vmatprep.mubr.bf16.mxu0 0
  %369 = vmatmul.mubr.bf16.gmra.mrb[0].mxu0 %v334
  %v370 = vpop.f32.mrb[0].mxu0
  %v371 = vadd.f32 %v318, %v370
  %v372 = vpop.f32.mrb[0].mxu0
  %v373 = vpop.f32.mrb[0].mxu0
  %v374 = vpop.f32.mrb[0].mxu0
  %375 = vdwg.mxu0
  %v376 = vmax.f32 %v371, 0.0
  %v377 = vpack.c.bf16 %v376, %v376
  %v378 = vld [vmem:[%s9] sm:$0xf]
  %v379 = vld [vmem:[%s9 + $0x4] sm:$0xf]
  %v380 = vld [vmem:[%s10] sm:$0x1]
  %v382 = vlaneseq
  %v383 = vshrl.u32 %v382, 7
  %v384 = vsub.s32 0, %v383
  %v385 = vrot.slane %v380, %v384
  %v389 = vunpack.c.l.b16 %v378
  %v390 = vunpack.c.l.b16 %v379
  %v391 = vpack.c.b16 %v390, %v389
  %v394 = vsel %vm53, %v377, 0
  %396 = vmatprep.subr.bf16.mxu0 0
  %397 = vmatpush1.bf16.msra.mxu0 %v391
  %398 = vmatprep.subr.bf16.mxu0 0
  %399 = vmatpush1.bf16.msra.mxu0 0
  %400 = vmatprep.subr.bf16.mxu0 0
  %401 = vmatpush1.bf16.msra.mxu0 0
  %402 = vmatprep.subr.bf16.mxu0 0
  %403 = vmatpush1.bf16.msra.mxu0 0
  %404 = vmatprep.subr.bf16.mxu0 0
  %405 = vmatpush1.bf16.msra.mxu0 0
  %406 = vmatprep.subr.bf16.mxu0 0
  %407 = vmatpush1.bf16.msra.mxu0 0
  %408 = vmatprep.subr.bf16.mxu0 0
  %409 = vmatpush1.bf16.msra.mxu0 0
  %410 = vmatprep.subr.bf16.mxu0 0
  %411 = vmatpush1.bf16.msra.mxu0 0
  %412 = vmatprep.subr.bf16.mxu0 0
  %413 = vmatpush1.bf16.msra.mxu0 0
  %414 = vmatprep.subr.bf16.mxu0 0
  %415 = vmatpush1.bf16.msra.mxu0 0
  %416 = vmatprep.subr.bf16.mxu0 0
  %417 = vmatpush1.bf16.msra.mxu0 0
  %418 = vmatprep.subr.bf16.mxu0 0
  %419 = vmatpush1.bf16.msra.mxu0 0
  %420 = vmatprep.subr.bf16.mxu0 0
  %421 = vmatpush1.bf16.msra.mxu0 0
  %422 = vmatprep.subr.bf16.mxu0 0
  %423 = vmatpush1.bf16.msra.mxu0 0
  %424 = vmatprep.subr.bf16.mxu0 0
  %425 = vmatpush1.bf16.msra.mxu0 0
  %426 = vmatprep.subr.bf16.mxu0 0
  %427 = vmatpush1.bf16.msra.mxu0 0
  %428 = vmatprep.mubr.bf16.mxu0 0
  %429 = vmatmul.mubr.bf16.gmra.mrb[0].mxu0 %v394
  %v430 = vpop.f32.mrb[0].mxu0
  %v431 = vadd.f32 %v385, %v430
  %v432 = vpop.f32.mrb[0].mxu0
  %v433 = vpop.f32.mrb[0].mxu0
  %v434 = vpop.f32.mrb[0].mxu0
  %435 = vdwg.mxu0
  %vm436 = vcmask 15360
  %437 = vst.msk [vmem:[%s11] sm:$0xff] %vm436, %v431
  // Predicated region
  $region46: #{tpu_custom_call.1} parent=0 // pred_check
    _
  $region47: #{tpu_custom_call.1} parent=0 // pred_check_branch
    %439 = sbr.rel (0) target = $region49
  $region48: #{tpu_custom_call.1} parent=0 // pred_region
    _
  $region49: #{tpu_custom_call.1} parent=0 // pred_fallthru
    _
  // Predicated region
  $region50: #{tpu_custom_call.1} parent=0 // pred_check
    _
  $region51: #{tpu_custom_call.1} parent=0 // pred_check_branch
    %441 = sbr.rel (0) target = $region53
  $region52: #{tpu_custom_call.1} parent=0 // pred_region
    _
  $region53: #{tpu_custom_call.1} parent=0 // pred_fallthru
    _

</llo_original>
